<compile_context>
chip_gen: v5e
topology: v5e:2x2
jax: 0.10.0
libtpu: 0.0.40
codegen_flags: <defaults>
</compile_context>

<pallas_src>
import functools
from collections import defaultdict

import jax
import jax.numpy as jnp
from jax import lax
from jax.experimental import pallas as pl
from jax.experimental.pallas import tpu as pltpu

# ----------------------------- config (cfg.*) --------------------------------
PIXEL_MEAN = jnp.array([0.45, 0.45, 0.45], jnp.float32)
PIXEL_STD = jnp.array([0.225, 0.225, 0.225], jnp.float32)
SSIM_LOSS_WEIGHT = 0.0    # TODO(synk): WeightedSSIM impl not provided; branch gated off as in forward.
SMOOTH_LOSS_W = 1e-3
SUP_LOSS_W = 0.0          # TODO(synk): silog supervised loss skipped (no depth GT / impl not provided).
VAR_LOSS_W = 1e-2
SCALE_NORMALIZE = True
POSE_USE_DEPTH = False
HIDDEN = 16


# ------------------------------ helpers ---------------------------------------
def _cparams(*sem):
    # Explicit VMEM budget (safe for v7x's 64 MiB physical) + megacore semantics.
    return pltpu.CompilerParams(dimension_semantics=sem,
                                vmem_limit_bytes=32 * 1024 * 1024)


def _lane_chunk(L, target=2048):
    """Largest multiple-of-128 divisor of L that is <= target (else full L)."""
    if L <= target:
        return L
    c = (target // 128) * 128
    while c >= 128:
        if L % c == 0:
            return c
        c -= 128
    return L


# ------------------------------ Pallas kernels --------------------------------
def _normalize_kernel(x_ref, m_ref, rs_ref, o_ref):
    # x: (R, LC) lane chunk of H*W; m, rs: (R, 1) per-row mean and 1/std.
    o_ref[...] = (x_ref[...] - m_ref[...]) * rs_ref[...]


def _depth_net_kernel(x_ref, w1_ref, b1_ref, w2_ref, b2_ref, o_ref):
    # Fused depth net for one image: 3x3 conv (3->HIDDEN) + relu + 1x1 conv
    # (HIDDEN->1) + softplus + 0.1, computed with 9 shifted MACs per hidden
    # channel.  Weights live in SMEM (scalar path), output is lane-dense (H, W).
    H, W = o_ref.shape[1], o_ref.shape[2]
    x = x_ref[0]                                            # (3, H+2, W+2)
    taps = [x[:, ky:ky + H, kx:kx + W]                      # each (3, H, W)
            for ky in range(3) for kx in range(3)]
    depth = jnp.zeros((H, W), jnp.float32)
    for hid in range(HIDDEN):
        acc = jnp.zeros((H, W), jnp.float32)
        for c in range(3):
            for t in range(9):
                acc = acc + w1_ref[(c * 9 + t) * HIDDEN + hid] * taps[t][c]
        acc = jnp.maximum(acc + b1_ref[hid], 0.0)
        depth = depth + w2_ref[hid] * acc
    depth = depth + b2_ref[0]
    # numerically stable softplus(x) = max(x,0) + log(1 + exp(-|x|))
    depth = jnp.maximum(depth, 0.0) + jnp.log(1.0 + jnp.exp(-jnp.abs(depth)))
    o_ref[0] = depth + 0.1


def _project_kernel(d_ref, p_ref, px_ref, py_ref, z_ref, m_ref):
    # d: (1, H, W) depth of frame A.  p (SMEM): (N, 12) = [K R K^-1 row-major, K t]
    n = pl.program_id(0)
    d = d_ref[...]
    H, W = d_ref.shape[1], d_ref.shape[2]
    u = lax.broadcasted_iota(jnp.float32, d.shape, 2)       # column index
    v = lax.broadcasted_iota(jnp.float32, d.shape, 1)       # row index
    x = u * d
    y = v * d
    z = d
    m00 = p_ref[n, 0]; m01 = p_ref[n, 1]; m02 = p_ref[n, 2]
    m10 = p_ref[n, 3]; m11 = p_ref[n, 4]; m12 = p_ref[n, 5]
    m20 = p_ref[n, 6]; m21 = p_ref[n, 7]; m22 = p_ref[n, 8]
    b0 = p_ref[n, 9]; b1 = p_ref[n, 10]; b2 = p_ref[n, 11]
    ph_x = m00 * x + m01 * y + m02 * z + b0
    ph_y = m10 * x + m11 * y + m12 * z + b1
    ph_z = m20 * x + m21 * y + m22 * z + b2
    eps = 1e-6
    z_safe = jnp.where(jnp.abs(ph_z) < eps, eps, ph_z)
    inv_z = pl.reciprocal(z_safe, approx=True)              # EUP, off the VPU critical path
    px = ph_x * inv_z
    py = ph_y * inv_z
    valid = ((px >= 0.0) & (px <= float(W - 1)) &
             (py >= 0.0) & (py <= float(H - 1)) & (ph_z > eps))
    px_ref[...] = px
    py_ref[...] = py
    z_ref[...] = ph_z
    m_ref[...] = valid.astype(jnp.float32)


def _masked_l1_kernel(a_ref, b_ref, m_ref, o_ref):
    # a, b: (N, C, LC); m: (N, 1, LC) broadcast over channels in-kernel.
    # Accumulates a global sum into a (1, 1) output across the lane-chunk grid.
    @pl.when(pl.program_id(0) == 0)
    def _():
        o_ref[...] = jnp.zeros_like(o_ref)
    diff = jnp.abs(a_ref[...] - b_ref[...]) * m_ref[...]
    part = jnp.sum(diff, axis=0)                            # (C, LC)
    o_ref[...] += jnp.sum(part, keepdims=True)


def _smooth_var_kernel(cx, cy, d_ref, img_ref, sm_ref, s1_ref, s2_ref):
    # Per-image edge-aware smoothness partial (already divided by per-image
    # mean depth and by the global element counts cx/cy) plus depth statistics
    # (sum d, sum d^2) for the variance loss.  Accumulated across the image grid.
    @pl.when(pl.program_id(0) == 0)
    def _():
        sm_ref[...] = jnp.zeros_like(sm_ref)
        s1_ref[...] = jnp.zeros_like(s1_ref)
        s2_ref[...] = jnp.zeros_like(s2_ref)
    d = d_ref[0]                                            # (H, W)
    img = img_ref[0]                                        # (3, H, W)
    mean_d = jnp.mean(d, keepdims=True)                     # (1, 1)
    dx = jnp.abs(d[:, 1:] - d[:, :-1])
    dy = jnp.abs(d[1:, :] - d[:-1, :])
    ix = jnp.mean(jnp.abs(img[:, :, 1:] - img[:, :, :-1]), axis=0)
    iy = jnp.mean(jnp.abs(img[:, 1:, :] - img[:, :-1, :]), axis=0)
    sx = jnp.sum(dx * jnp.exp(-ix), keepdims=True)          # (1, 1)
    sy = jnp.sum(dy * jnp.exp(-iy), keepdims=True)
    sm_ref[...] += (sx * cx + sy * cy) / (mean_d + 1e-7)
    s1_ref[...] += jnp.sum(d, keepdims=True)
    s2_ref[...] += jnp.sum(d * d, keepdims=True)


# ------------------------------ Pallas wrappers --------------------------------
def pallas_normalize(x, mean, std):
    B, C, H, W = x.shape
    R, L = B * C, H * W
    xf = x.reshape(R, L).astype(jnp.float32)
    mf = jnp.tile(mean.reshape(1, C), (B, 1)).reshape(R, 1).astype(jnp.float32)
    rs = jnp.tile((1.0 / std).reshape(1, C), (B, 1)).reshape(R, 1).astype(jnp.float32)
    LC = _lane_chunk(L, 2048)
    out = pl.pallas_call(
        _normalize_kernel,
        out_shape=jax.ShapeDtypeStruct((R, L), jnp.float32),
        grid=(L // LC,),
        in_specs=[pl.BlockSpec((R, LC), lambda i: (0, i)),
                  pl.BlockSpec((R, 1), lambda i: (0, 0)),
                  pl.BlockSpec((R, 1), lambda i: (0, 0))],
        out_specs=pl.BlockSpec((R, LC), lambda i: (0, i)),
        compiler_params=_cparams("parallel"),
    )(xf, mf, rs)
    return out.reshape(B, C, H, W)


def pallas_project(depth, params):
    # depth: (N, H, W); params: (N, 12) held in SMEM (scalar path).
    N, H, W = depth.shape
    shapes = tuple(jax.ShapeDtypeStruct((N, H, W), jnp.float32) for _ in range(4))
    smem = pl.BlockSpec(memory_space=pltpu.MemorySpace.SMEM)
    px, py, z, mask = pl.pallas_call(
        _project_kernel,
        out_shape=shapes,
        grid=(N,),
        in_specs=[pl.BlockSpec((1, H, W), lambda n: (n, 0, 0)), smem],
        out_specs=tuple(pl.BlockSpec((1, H, W), lambda n: (n, 0, 0)) for _ in range(4)),
        compiler_params=_cparams("parallel"),
    )(depth.astype(jnp.float32), params.astype(jnp.float32))
    return px, py, z, mask


def pallas_masked_l1_mean(a, b, mask):
    # a, b: (N, C, h, w); mask: (N, 1, h, w) — mask broadcast happens in-kernel.
    N, C, h, w = a.shape
    L = h * w
    a2 = a.reshape(N, C, L).astype(jnp.float32)
    b2 = b.reshape(N, C, L).astype(jnp.float32)
    m2 = mask.reshape(N, 1, L).astype(jnp.float32)
    LC = _lane_chunk(L, 8192)
    s = pl.pallas_call(
        _masked_l1_kernel,
        out_shape=jax.ShapeDtypeStruct((1, 1), jnp.float32),
        grid=(L // LC,),
        in_specs=[pl.BlockSpec((N, C, LC), lambda i: (0, 0, i)),
                  pl.BlockSpec((N, C, LC), lambda i: (0, 0, i)),
                  pl.BlockSpec((N, 1, LC), lambda i: (0, 0, i))],
        out_specs=pl.BlockSpec((1, 1), lambda i: (0, 0)),
        compiler_params=_cparams("arbitrary"),
    )(a2, b2, m2)
    return s[0, 0] / float(N * C * L)


def pallas_smooth_var(depth, img):
    # Fused per-scale reduction: edge-aware smoothness + depth sum / sq-sum.
    d = depth[:, 0].astype(jnp.float32)                     # (N, H, W)
    img = img.astype(jnp.float32)                           # (N, 3, H, W)
    N, H, W = d.shape
    cx = 1.0 / float(N * H * (W - 1))
    cy = 1.0 / float(N * (H - 1) * W)
    kern = functools.partial(_smooth_var_kernel, cx, cy)
    sm, s1, s2 = pl.pallas_call(
        kern,
        out_shape=tuple(jax.ShapeDtypeStruct((1, 1), jnp.float32) for _ in range(3)),
        grid=(N,),
        in_specs=[pl.BlockSpec((1, H, W), lambda n: (n, 0, 0)),
                  pl.BlockSpec((1, 3, H, W), lambda n: (n, 0, 0, 0))],
        out_specs=tuple(pl.BlockSpec((1, 1), lambda n: (0, 0)) for _ in range(3)),
        compiler_params=_cparams("arbitrary"),
    )(d, img)
    return sm[0, 0], s1[0, 0], s2[0, 0], float(N * H * W)


def variance_loss_from_stats(s1, s2, count):
    # TODO(synk): exact variance_loss_fn not provided; placeholder 1/(var of
    # mean-normalized depth), computed exactly from accumulated sum / sq-sum.
    mu = s1 / count
    mu_e = mu + 1e-7
    var = s2 / (count * mu_e * mu_e) - 2.0 * s1 / (count * mu_e) + 1.0
    return 1.0 / (var + 1e-4)


# --------------------------------- JAX glue ------------------------------------
def merge_loss(losses, new_losses, w=1.0):
    for k, v in new_losses.items():
        if 'loss' in k:
            losses[k] += v * w
    return losses


def resize_img_avgpool(x, dst_size):
    H, W = x.shape[-2:]
    h, w = dst_size
    if (H, W) == (h, w):
        return x
    fy, fx = H // h, W // w
    return x.reshape(*x.shape[:-2], h, fy, w, fx).mean(axis=(-3, -1))


def scale_intrinsics(K, x_scale, y_scale):
    K = K.at[:, 0, :].multiply(x_scale)
    K = K.at[:, 1, :].multiply(y_scale)
    return K


def bilinear_sample(img, px, py):
    # TODO(synk): data-dependent gather stays in XLA; a Pallas in-VMEM gather
    # (resident source tile + jnp.take) would avoid 4x random HBM access.
    N, C, H, W = img.shape
    x0 = jnp.floor(px)
    y0 = jnp.floor(py)
    wx = (px - x0)[:, None]
    wy = (py - y0)[:, None]
    x0i = jnp.clip(x0, 0, W - 1).astype(jnp.int32)
    x1i = jnp.clip(x0 + 1, 0, W - 1).astype(jnp.int32)
    y0i = jnp.clip(y0, 0, H - 1).astype(jnp.int32)
    y1i = jnp.clip(y0 + 1, 0, H - 1).astype(jnp.int32)
    flat = img.reshape(N, C, H * W)

    def gather(yy, xx):
        idx = (yy * W + xx).reshape(N, 1, H * W)
        idx = jnp.broadcast_to(idx, (N, C, H * W))
        return jnp.take_along_axis(flat, idx, axis=2).reshape(N, C, H, W)

    v00 = gather(y0i, x0i)
    v01 = gather(y0i, x1i)
    v10 = gather(y1i, x0i)
    v11 = gather(y1i, x1i)
    top = v00 * (1.0 - wx) + v01 * wx
    bot = v10 * (1.0 - wx) + v11 * wx
    return top * (1.0 - wy) + bot * wy


def axis_angle_to_matrix(r):
    theta = jnp.sqrt(jnp.sum(r * r, axis=-1, keepdims=True) + 1e-12)
    axis = r / theta
    x, y, z = axis[:, 0], axis[:, 1], axis[:, 2]
    c = jnp.cos(theta[:, 0])
    s = jnp.sin(theta[:, 0])
    C = 1.0 - c
    R = jnp.stack([
        jnp.stack([c + x * x * C, x * y * C - z * s, x * z * C + y * s], axis=-1),
        jnp.stack([y * x * C + z * s, c + y * y * C, y * z * C - x * s], axis=-1),
        jnp.stack([z * x * C - y * s, z * y * C + x * s, c + z * z * C], axis=-1),
    ], axis=1)
    return R


# ------------------------ synthetic depth / pose nets ---------------------------
def init_params(key):
    k1, k2, k3 = jax.random.split(key, 3)
    return {
        'conv1_w': jax.random.normal(k1, (3 * 9, HIDDEN), jnp.float32) * 0.1,
        'conv1_b': jnp.zeros((HIDDEN,), jnp.float32),
        'conv2_w': jax.random.normal(k2, (HIDDEN, 1), jnp.float32) * 0.1,
        'conv2_b': jnp.zeros((1,), jnp.float32),
        'pose_w': jax.random.normal(k3, (6, 6), jnp.float32) * 0.1,
        'pose_b': jnp.zeros((6,), jnp.float32),
    }


def depth_net_forward(xn, params):
    # xn: (2N, 3, H, W) normalized frames. Fully fused Pallas depth net
    # (no im2col, no HBM round-trip for the hidden activations).
    B2, C, H, W = xn.shape
    assert C == 3
    xp = jnp.pad(xn, ((0, 0), (0, 0), (1, 1), (1, 1)))
    w1 = params['conv1_w'].reshape(-1).astype(jnp.float32)   # (27*HIDDEN,) c-major, tap, hid
    b1 = params['conv1_b'].astype(jnp.float32)
    w2 = params['conv2_w'].reshape(-1).astype(jnp.float32)   # (HIDDEN,)
    b2 = params['conv2_b'].astype(jnp.float32)
    smem = pl.BlockSpec(memory_space=pltpu.MemorySpace.SMEM)
    d = pl.pallas_call(
        _depth_net_kernel,
        out_shape=jax.ShapeDtypeStruct((B2, H, W), jnp.float32),
        grid=(B2,),
        in_specs=[pl.BlockSpec((1, C, H + 2, W + 2), lambda b: (b, 0, 0, 0)),
                  smem, smem, smem, smem],
        out_specs=pl.BlockSpec((1, H, W), lambda b: (b, 0, 0)),
        compiler_params=_cparams("parallel"),
    )(xp, w1, b1, w2, b2)
    d0 = d[:, None]                                          # (2N, 1, H, W)
    d1 = resize_img_avgpool(d0, (H // 2, W // 2))            # second scale
    return [d0, d1]


def pose_net_forward(x, params):
    # Tiny (2N, 6) x (6, 6) linear: left to XLA (too small for a Pallas kernel).
    pooled = jnp.mean(x, axis=(2, 3))                        # (2N, 6)
    out = pooled @ params['pose_w'] + params['pose_b']
    rot = out[:, :3] * 0.01
    trans = out[:, 3:] * 0.01
    R = axis_angle_to_matrix(rot)
    B = x.shape[0]
    T = jnp.tile(jnp.eye(4, dtype=jnp.float32)[None], (B, 1, 1))
    T = T.at[:, :3, :3].set(R).at[:, :3, 3].set(trans)
    return T


# ------------------------------ loss building blocks ---------------------------
def view_synthesis(values_B, depth_A, K, R, t):
    # values_B: (N, C, H, W); depth_A: (N, 1, H, W); K,R: (N,3,3); t: (N,3,1,1)
    N = depth_A.shape[0]
    Kinv = jnp.linalg.inv(K)
    M = jnp.einsum('nij,njk,nkl->nil', K, R, Kinv)
    b = jnp.einsum('nij,nj->ni', K, t[:, :, 0, 0])
    params = jnp.concatenate([M.reshape(N, 9), b], axis=1)   # (N, 12)
    px, py, z, mask = pallas_project(depth_A[:, 0], params)
    sampled = bilinear_sample(values_B, px, py)
    coords = jnp.stack([px, py], axis=1)
    return sampled, z[:, None], coords, mask[:, None]


def rgbd_consistency_loss(frame_A, frame_B, depth_A, depth_B, intrinsics, R_A2B, t_A2B):
    ret = {}
    sampled, depth_in_B, coords, proj_mask = view_synthesis(
        jnp.concatenate([frame_B, depth_B], axis=1), depth_A, intrinsics, R_A2B, t_A2B)
    ret['coords_A_in_B'] = coords
    ret['proj_mask'] = proj_mask
    sampled_frame_B = sampled[:, :3]
    sampled_depth_B = sampled[:, 3:4]
    mask = lax.stop_gradient(
        (depth_in_B < sampled_depth_B).astype(jnp.float32) * proj_mask)
    ret['rgb_l1_loss'] = pallas_masked_l1_mean(sampled_frame_B, frame_A, mask)
    # TODO(synk): SSIM branch (WeightedSSIM, depth-proximity weighting) disabled: SSIM_LOSS_WEIGHT == 0.
    return ret


# --------------------------------- full forward --------------------------------
def motion_learning_forward(batch, params):
    frame1 = batch['img']
    frame2 = batch['ctx_img'][0]
    N = frame1.shape[0]

    frames = jnp.concatenate([frame1, frame2], axis=0)
    depth_net_input = pallas_normalize(frames, PIXEL_MEAN, PIXEL_STD)
    depth_pred = depth_net_forward(depth_net_input, params)
    depth1 = [d[:N] for d in depth_pred]
    depth2 = [d[N:] for d in depth_pred]

    pose_in_1, pose_in_2 = frame1, frame2        # POSE_USE_DEPTH = False
    pose_net_input = jnp.concatenate([
        jnp.concatenate([pose_in_1, pose_in_2], axis=1),
        jnp.concatenate([pose_in_2, pose_in_1], axis=1)], axis=0)
    pose_pred = pose_net_forward(pose_net_input, params)
    pose_1to2, pose_2to1 = pose_pred[:N], pose_pred[N:]
    # no motion head in this pose net -> motion_pred branch skipped

    if SCALE_NORMALIZE:
        depth_mean = jnp.mean(jnp.concatenate([depth1[0], depth2[0]], axis=0))
        depth1_n = [d / depth_mean for d in depth1]
        depth2_n = [d / depth_mean for d in depth2]
        pose_1to2 = pose_1to2.at[:, :3, 3].divide(depth_mean)
        pose_2to1 = pose_2to1.at[:, :3, 3].divide(depth_mean)
    else:
        depth1_n, depth2_n = depth1, depth2

    losses = defaultdict(float)
    num_scales = len(depth1)
    for i in range(num_scales):
        scale_w = 1.0 / 2 ** i
        hs, ws = depth1[i].shape[-2:]
        rf1 = resize_img_avgpool(frame1, (hs, ws))
        rf2 = resize_img_avgpool(frame2, (hs, ws))
        K = scale_intrinsics(batch['intrinsics'],
                             x_scale=ws / frame1.shape[-1],
                             y_scale=hs / frame1.shape[-2])
        R12 = pose_1to2[:, :3, :3]
        R21 = pose_2to1[:, :3, :3]
        t12 = pose_1to2[:, :3, 3][:, :, None, None]
        t21 = pose_2to1[:, :3, 3][:, :, None, None]

        out12 = rgbd_consistency_loss(rf1, rf2, depth1_n[i], depth2_n[i], K, R12, t12)
        losses = merge_loss(losses, out12, scale_w)
        out21 = rgbd_consistency_loss(rf2, rf1, depth2_n[i], depth1_n[i], K, R21, t21)
        losses = merge_loss(losses, out21, scale_w)

        # SUP_LOSS_W == 0.0 -> supervised (silog) branch skipped, matching the gated code path.
        if SMOOTH_LOSS_W > 0.0 or VAR_LOSS_W > 0.0:
            sm1, s1a, s2a, cnt1 = pallas_smooth_var(depth1[i], rf1)
            sm2, s1b, s2b, cnt2 = pallas_smooth_var(depth2[i], rf2)
            if SMOOTH_LOSS_W > 0.0:
                losses['smooth_loss'] += (sm1 + sm2) * scale_w * SMOOTH_LOSS_W
            if VAR_LOSS_W > 0.0:
                losses['var_loss'] += (variance_loss_from_stats(s1a, s2a, cnt1) +
                                       variance_loss_from_stats(s1b, s2b, cnt2)) * scale_w * VAR_LOSS_W

    return dict(losses)


# ------------------------------------ main --------------------------------------
if __name__ == "__main__":
    key = jax.random.PRNGKey(0)
    k_img, k_ctx, k_param = jax.random.split(key, 3)
    N, C, H, W = 2, 3, 16, 16
    img = jax.random.uniform(k_img, (N, C, H, W), jnp.float32)
    ctx = jax.random.uniform(k_ctx, (N, C, H, W), jnp.float32)
    fx = fy = 0.8 * W
    K0 = jnp.array([[fx, 0.0, W / 2 - 0.5],
                    [0.0, fy, H / 2 - 0.5],
                    [0.0, 0.0, 1.0]], jnp.float32)
    batch = {
        'img': img,
        'ctx_img': [ctx],
        'intrinsics': jnp.tile(K0[None], (N, 1, 1)),
    }
    params = init_params(k_param)

    out = motion_learning_forward(batch, params)
    out = jax.block_until_ready(out)
    assert set(out.keys()) >= {'rgb_l1_loss', 'smooth_loss', 'var_loss'}
    assert all(bool(jnp.isfinite(v)) for v in out.values())
    print("KERNEL_OK")
</pallas_src>

<mosaic_0001>
module attributes {stable_mosaic.version = 11 : i64} {
  func.func @_normalize_kernel(%arg0: i32, %arg1: memref<12x256xf32, #tpu.memory_space<vmem>>, %arg2: memref<12x1xf32, #tpu.memory_space<vmem>>, %arg3: memref<12x1xf32, #tpu.memory_space<vmem>>, %arg4: memref<12x256xf32, #tpu.memory_space<vmem>>) attributes {dimension_semantics = [#tpu.dimension_semantics<parallel>], iteration_bounds = array<i64: 1>, scalar_prefetch = 0 : i64, scratch_operands = 0 : i64, tpu.core_type = #tpu.core_type<tc>, window_params = [{transform_indices = @transform_0, window_bounds = array<i64: 12, 256>}, {pipeline_mode = #tpu.pipeline_mode<synchronous>, transform_indices = @transform_1, window_bounds = array<i64: 12, 1>}, {pipeline_mode = #tpu.pipeline_mode<synchronous>, transform_indices = @transform_2, window_bounds = array<i64: 12, 1>}, {transform_indices = @transform_3, window_bounds = array<i64: 12, 256>}]} {
    %c0 = arith.constant 0 : index
    %c0_0 = arith.constant 0 : index
    %0 = vector.load %arg1[%c0, %c0_0] : memref<12x256xf32, #tpu.memory_space<vmem>>, vector<12x256xf32>
    %c0_1 = arith.constant 0 : index
    %c0_2 = arith.constant 0 : index
    %1 = vector.load %arg2[%c0_1, %c0_2] : memref<12x1xf32, #tpu.memory_space<vmem>>, vector<12x1xf32>
    %2 = vector.broadcast %1 : vector<12x1xf32> to vector<12x256xf32>
    %3 = arith.subf %0, %2 : vector<12x256xf32>
    %c0_3 = arith.constant 0 : index
    %c0_4 = arith.constant 0 : index
    %4 = vector.load %arg3[%c0_3, %c0_4] : memref<12x1xf32, #tpu.memory_space<vmem>>, vector<12x1xf32>
    %5 = vector.broadcast %4 : vector<12x1xf32> to vector<12x256xf32>
    %6 = arith.mulf %3, %5 : vector<12x256xf32>
    %c0_5 = arith.constant 0 : index
    %c0_6 = arith.constant 0 : index
    %7 = vector.load %arg4[%c0_5, %c0_6] : memref<12x256xf32, #tpu.memory_space<vmem>>, vector<12x256xf32>
    tpu.vector_store %arg4[%c0_5, %c0_6], %6 {strides = array<i32>} : memref<12x256xf32, #tpu.memory_space<vmem>>, vector<12x256xf32>,
    return
  }
  func.func @transform_0(%arg0: i32) -> (i32, i32) {
    %c0_i32 = arith.constant 0 : i32
    %c0_i32_0 = arith.constant 0 : i32
    return %c0_i32, %arg0 : i32, i32
  }
  func.func @transform_1(%arg0: i32) -> (i32, i32) {
    %c0_i32 = arith.constant 0 : i32
    %c0_i32_0 = arith.constant 0 : i32
    %c0_i32_1 = arith.constant 0 : i32
    return %c0_i32, %c0_i32_0 : i32, i32
  }
  func.func @transform_2(%arg0: i32) -> (i32, i32) {
    %c0_i32 = arith.constant 0 : i32
    %c0_i32_0 = arith.constant 0 : i32
    %c0_i32_1 = arith.constant 0 : i32
    return %c0_i32, %c0_i32_0 : i32, i32
  }
  func.func @transform_3(%arg0: i32) -> (i32, i32) {
    %c0_i32 = arith.constant 0 : i32
    %c0_i32_0 = arith.constant 0 : i32
    return %c0_i32, %arg0 : i32, i32
  }
}

</mosaic_0001>

<llo_original>
// kernel: tpu_custom_call.1
$region0: #{tpu_custom_call.1}
  #allocation0 [shape = 'u32[]', space=smem, size = 0x4, offset = 0x4, fixed_abs, tag = 'smem constant byte address 0x4 - core index']
  #allocation1 [shape = 'u32[72,128]{1,0:T(1,128)}', space=vmem, size = 0x9000, scoped, tag = 'internal scratch']
  %s0 = inlined_call_operand.vmem [shape: f32[12,256], index: 0, kind: input, shape index: {}]
  %s1 = inlined_call_operand.vmem [shape: f32[12,1], index: 1, kind: input, shape index: {}]
  %s2 = inlined_call_operand.vmem [shape: f32[12,1], index: 2, kind: input, shape index: {}]
  %s3 = inlined_call_operand.hbm [shape: f32[12,256], index: 3, kind: output, shape index: {}]
  %s4 = sld [smem:[#allocation0]]
  $region22: #{tpu_custom_call.1} parent=0
    _
  %s6 = ssub.s32 1, %s4
  %s7 = scalar_select 0, %s6, %s4
  $region1: #{tpu_custom_call.1} parent=0
    #allocation2 [shape = 'u8[16384]{0}', space=vmem, size = 0x4000, scoped, tag = 'output window, operand 0, single buffered']
    #allocation3 [shape = 's32[1]{0}', space=sflag, size = 0x4, scoped, tag = 'scoped memory for tpu_custom_call.1']
    %8 = vsyncpa [#allocation3], 0
    // Predicated region
    $region2: #{tpu_custom_call.1} parent=1 // pred_check
      _
    $region3: #{tpu_custom_call.1} parent=1 // pred_check_branch
      %10 = sbr.rel (0) target = $region5
    $region4: #{tpu_custom_call.1} parent=1 // pred_region
      _
    $region5: #{tpu_custom_call.1} parent=1 // pred_fallthru
      _
    // Predicated region
    $region6: #{tpu_custom_call.1} parent=1 // pred_check
      _
    $region7: #{tpu_custom_call.1} parent=1 // pred_check_branch
      %12 = sbr.rel (0) target = $region9
    $region8: #{tpu_custom_call.1} parent=1 // pred_region
      _
    $region9: #{tpu_custom_call.1} parent=1 // pred_fallthru
      _
    // Predicated region
    $region10: #{tpu_custom_call.1} parent=1 // pred_check
      _
    $region11: #{tpu_custom_call.1} parent=1 // pred_check_branch
      %14 = sbr.rel (0) target = $region13
    $region12: #{tpu_custom_call.1} parent=1 // pred_region
      _
    $region13: #{tpu_custom_call.1} parent=1 // pred_fallthru
      _
    %v15 = vld [vmem:[%s0] sm:$0xff]
    %v16 = vld [vmem:[%s0 + $0x8] sm:$0xff]
    %v17 = vld [vmem:[%s0 + $0x10] sm:$0xf]
    %v18 = vld [vmem:[%s0 + $0x18] sm:$0xf]
    %v19 = vld [vmem:[%s1] sm:$0xff]
    %v20 = vld [vmem:[%s1 + $0x8] sm:$0xf]
    %22 = vset.pattern.permute.xlu0 0
    %23 = vperm.xlu0 %22, %v19
    %v24 = vpop.permute.xlu0 %23
    %27 = vset.pattern.permute.xlu0 0
    %28 = vperm.xlu0 %27, %v20
    %v29 = vpop.permute.xlu0 %28
    %v31 = vsub.f32 %v15, %v24
    %v32 = vsub.f32 %v16, %v24
    %v33 = vsub.f32 %v17, %v29
    %v34 = vsub.f32 %v18, %v29
    %v35 = vld [vmem:[%s2] sm:$0xff]
    %v36 = vld [vmem:[%s2 + $0x8] sm:$0xf]
    %38 = vset.pattern.permute.xlu0 0
    %39 = vperm.xlu0 %38, %v35
    %v40 = vpop.permute.xlu0 %39
    %43 = vset.pattern.permute.xlu0 0
    %44 = vperm.xlu0 %43, %v36
    %v45 = vpop.permute.xlu0 %44
    %v47 = vmul.f32 %v31, %v40
    %v48 = vmul.f32 %v32, %v40
    %v49 = vmul.f32 %v33, %v45
    %v50 = vmul.f32 %v34, %v45
    %51 = vst [vmem:[#allocation2] sm:$0xff] %v47
    %52 = vst [vmem:[#allocation2 + $0x8] sm:$0xff] %v48
    %53 = vst [vmem:[#allocation2 + $0x10] sm:$0xf] %v49
    %54 = vst [vmem:[#allocation2 + $0x18] sm:$0xf] %v50
    // Predicated region
    $region14: #{tpu_custom_call.1} parent=1 // pred_check
      _
    $region15: #{tpu_custom_call.1} parent=1 // pred_check_branch
      %56 = sbr.rel (0) target = $region17
    $region16: #{tpu_custom_call.1} parent=1 // pred_region
      %58 = vsyncadd [#allocation3], 0
      %s59 = sshll.u32 [#allocation2], 4
      %s60 = int_to_ptr.vmem [resolvable:$true] %s59
      %s61 = sshll.u32 %s3, 4
      %s62 = int_to_ptr.hbm [resolvable:$true] %s61
      %67 = dma.vmem_to_hbm [thread:$0]  %s60, 512, %s62, [#allocation3], 256, 256, 16
    $region17: #{tpu_custom_call.1} parent=1 // pred_fallthru
      _
    // Predicated region
    $region18: #{tpu_custom_call.1} parent=1 // pred_check
      _
    $region19: #{tpu_custom_call.1} parent=1 // pred_check_branch
      %69 = sbr.rel (0) target = $region21
    $region20: #{tpu_custom_call.1} parent=1 // pred_region
      %71 = dma.done [#allocation3], 512
    $region21: #{tpu_custom_call.1} parent=1 // pred_fallthru
      _
    %72 = vsyncpa [#allocation3], 1

</llo_original>
